<compile_context>
chip_gen: v7x
topology: tpu7x:2x2x1
jax: 0.10.0
libtpu: 0.0.40
codegen_flags: <defaults>
</compile_context>

<pallas_src>
import math
import functools

import jax
import jax.numpy as jnp
from jax.experimental import pallas as pl
from jax.experimental.pallas import tpu as pltpu


def _round_up(a: int, b: int) -> int:
    return ((a + b - 1) // b) * b


# ----------------------------------------------------------------------------- hw probes


@functools.lru_cache(maxsize=None)
def _vmem_capacity_bytes() -> int:
    """Physical VMEM per TensorCore; conservative fallback if the query fails."""
    try:
        return int(pltpu.get_tpu_info().vmem_capacity_bytes)
    except Exception:
        return 64 * 1024 * 1024  # v7x per-TC size (most conservative)


@functools.lru_cache(maxsize=None)
def _single_buffer_supported() -> bool:
    """One-time probe: does this Pallas build accept pipeline_mode=pl.Buffered(1)
    on a constant-index block?  Tiny dummy kernel, compiled & run once."""
    try:
        def probe_kernel(w_ref, x_ref, o_ref):
            o_ref[...] = x_ref[...] + w_ref[...]

        f = pl.pallas_call(
            probe_kernel,
            out_shape=jax.ShapeDtypeStruct((16, 128), jnp.float32),
            grid_spec=pltpu.PrefetchScalarGridSpec(
                num_scalar_prefetch=0,
                grid=(2,),
                in_specs=[
                    pl.BlockSpec((8, 128), lambda i: (0, 0),
                                 pipeline_mode=pl.Buffered(1)),
                    pl.BlockSpec((8, 128), lambda i: (i, 0)),
                ],
                out_specs=pl.BlockSpec((8, 128), lambda i: (i, 0)),
            ),
        )
        jax.block_until_ready(
            f(jnp.zeros((8, 128), jnp.float32), jnp.zeros((16, 128), jnp.float32)))
        return True
    except Exception:
        return False


# ----------------------------------------------------------------------------- kernel


def _lem_kernel(x_ref, y_ref, z_ref,
                wi_ref, wh_ref,          # (ninp_p, 4*nhid_p) [dt1,dt2,y,z], (nhid_p, 3*nhid_p) [dt1,dt2,y]
                b3_ref, biz_ref,         # (1, 3*nhid_p) fused bi+bh, (1, nhid_p) bi_z
                wz_ref, bz_ref,          # transform_z: (nhid_p, nhid_p), (1, nhid_p)
                y_out_ref, z_out_ref,
                *, dt: float, nhid_p: int):
    y = y_ref[...]                       # f32 (gating precision)
    z = z_ref[...]                       # f32
    x_lp = x_ref[...]                    # already bf16 (matmul dtype)
    y_lp = y.astype(wh_ref.dtype)        # cast once in VMEM, y read from HBM once

    # Input matmul covers all four gates (i_z last); hidden matmul covers three.
    gi = jnp.dot(x_lp, wi_ref[...], preferred_element_type=jnp.float32)   # (bm, 4*nhid_p)
    gh = jnp.dot(y_lp, wh_ref[...], preferred_element_type=jnp.float32)   # (bm, 3*nhid_p)

    g3 = gi[:, :3 * nhid_p] + gh + b3_ref[...]
    g_z = gi[:, 3 * nhid_p:] + biz_ref[...]

    # nhid_p is a multiple of 128 -> lane-aligned static views.
    g_dt1 = g3[:, 0 * nhid_p:1 * nhid_p]
    g_dt2 = g3[:, 1 * nhid_p:2 * nhid_p]
    g_y   = g3[:, 2 * nhid_p:3 * nhid_p]

    # Gating math in f32; sigmoid/tanh lower to EUP transcendentals.
    ms_dt_bar = dt * jax.nn.sigmoid(g_dt1)
    ms_dt     = dt * jax.nn.sigmoid(g_dt2)

    z_new = (1.0 - ms_dt) * z + ms_dt * jnp.tanh(g_y)

    tz = jnp.dot(z_new.astype(wz_ref.dtype), wz_ref[...],
                 preferred_element_type=jnp.float32) + bz_ref[...]
    y_new = (1.0 - ms_dt_bar) * y + ms_dt_bar * jnp.tanh(tz + g_z)

    y_out_ref[...] = y_new.astype(y_out_ref.dtype)
    z_out_ref[...] = z_new.astype(z_out_ref.dtype)


# ----------------------------------------------------------------------------- weight prep (call ONCE)


def prepare_lem_weights(params, ninp, nhid, matmul_dtype=jnp.bfloat16):
    """Build the padded / reordered / casted weight slab.  Call once and reuse
    across timesteps in a recurrent driver."""
    wi, bi, wh, bh, wz, bz = params
    ninp_p = _round_up(max(ninp, 1), 16)   # bf16 sublane-friendly K padding
    nhid_p = _round_up(nhid, 128)          # lane-aligned gate width

    def pad2(w, rows, cols):
        return jnp.pad(w, ((0, rows - w.shape[0]), (0, cols - w.shape[1])))

    def pad1(b, cols):
        return jnp.pad(b, (0, cols - b.shape[0]))

    # PyTorch gate order: wi -> [dt1, dt2, z, y], wh -> [dt1, dt2, y].
    wi_g = [pad2(wi[:, k * nhid:(k + 1) * nhid], ninp_p, nhid_p) for k in range(4)]
    wh_g = [pad2(wh[:, k * nhid:(k + 1) * nhid], nhid_p, nhid_p) for k in range(3)]

    # Kernel gate order for the input matmul: [dt1, dt2, y, z] (i_z last, no wh block).
    wi_cat = jnp.concatenate([wi_g[0], wi_g[1], wi_g[3], wi_g[2]],
                             axis=1).astype(matmul_dtype)          # (ninp_p, 4*nhid_p)
    wh_cat = jnp.concatenate(wh_g, axis=1).astype(matmul_dtype)    # (nhid_p, 3*nhid_p)

    bi_g = [pad1(bi[k * nhid:(k + 1) * nhid], nhid_p) for k in range(4)]
    bh_g = [pad1(bh[k * nhid:(k + 1) * nhid], nhid_p) for k in range(3)]
    b3 = jnp.concatenate([bi_g[0] + bh_g[0], bi_g[1] + bh_g[1], bi_g[3] + bh_g[2]],
                         axis=0).reshape(1, 3 * nhid_p).astype(jnp.float32)
    biz = bi_g[2].reshape(1, nhid_p).astype(jnp.float32)

    wz_p = pad2(wz, nhid_p, nhid_p).astype(matmul_dtype)
    bz_p = pad1(bz, nhid_p).reshape(1, nhid_p).astype(jnp.float32)

    return dict(wi=wi_cat, wh=wh_cat, b3=b3, biz=biz, wz=wz_p, bz=bz_p,
                ninp=ninp, nhid=nhid, ninp_p=ninp_p, nhid_p=nhid_p,
                matmul_dtype=matmul_dtype)


# ----------------------------------------------------------------------------- wrapper


def _choose_bm(B, nhid_p):
    """Batch tile: minimize padding waste, prefer >=2 grid steps (megacore),
    cap at 128 for big nhid or small-VMEM (v7x) chips."""
    cap = 256
    if nhid_p >= 1024 or _vmem_capacity_bytes() <= 64 * 1024 * 1024:
        cap = 128
    best_key, best_bm = None, 16
    for c in (256, 128, 64, 32, 16):
        if c > cap:
            continue
        b_pad = _round_up(B, c)
        key = (b_pad - B, 0 if (b_pad // c) >= 2 else 1, -c)
        if best_key is None or key < best_key:
            best_key, best_bm = key, c
    return best_bm


def _lem_pallas_call(x_lp, y_p, z_p, pw, *, dt, bm, single_buffer):
    B_pad, ninp_p = x_lp.shape
    nhid_p = pw["nhid_p"]
    grid = (B_pad // bm,)

    def const_spec(shape):
        # Constant-index weight/bias blocks don't need double buffers.
        if single_buffer:
            return pl.BlockSpec(shape, lambda i: (0, 0),
                                pipeline_mode=pl.Buffered(1))
        return pl.BlockSpec(shape, lambda i: (0, 0))

    def batch_spec(ncols):
        return pl.BlockSpec((bm, ncols), lambda i: (i, 0))

    kernel = functools.partial(_lem_kernel, dt=dt, nhid_p=nhid_p)

    # Cost hint for the XLA scheduler.
    flops = 2 * B_pad * (ninp_p * 4 * nhid_p + nhid_p * 3 * nhid_p + nhid_p * nhid_p)
    transcendentals = 4 * B_pad * nhid_p
    w_itemsize = pw["wi"].dtype.itemsize
    bytes_accessed = (x_lp.size * x_lp.dtype.itemsize
                      + (y_p.size + z_p.size) * 4
                      + (pw["wi"].size + pw["wh"].size + pw["wz"].size) * w_itemsize
                      + (pw["b3"].size + pw["biz"].size + pw["bz"].size) * 4
                      + 2 * B_pad * nhid_p * 4)
    cost = pl.CostEstimate(flops=flops, transcendentals=transcendentals,
                           bytes_accessed=bytes_accessed)

    # Explicit VMEM budget, capped at ~85% of physical VMEM (generation-aware:
    # 128 MiB on v5e/v6e, 64 MiB on v7x).
    w_bufs = 1 if single_buffer else 2
    weight_bytes = w_bufs * ((pw["wi"].size + pw["wh"].size + pw["wz"].size) * w_itemsize
                             + (pw["b3"].size + pw["biz"].size + pw["bz"].size) * 4)
    io_bytes = 2 * (bm * ninp_p * x_lp.dtype.itemsize + 4 * bm * nhid_p * 4)
    interm_bytes = 10 * bm * nhid_p * 4
    needed = int(1.5 * (weight_bytes + io_bytes + interm_bytes))
    vmem_cap = int(0.85 * _vmem_capacity_bytes())
    vmem_limit = max(min(max(needed, 32 * 1024 * 1024), vmem_cap), 16 * 1024 * 1024)

    return pl.pallas_call(
        kernel,
        out_shape=(jax.ShapeDtypeStruct((B_pad, nhid_p), jnp.float32),
                   jax.ShapeDtypeStruct((B_pad, nhid_p), jnp.float32)),
        grid_spec=pltpu.PrefetchScalarGridSpec(
            num_scalar_prefetch=0,
            grid=grid,
            in_specs=[
                batch_spec(ninp_p),                 # x   (bf16, matmul operand)
                batch_spec(nhid_p),                 # y   (f32, gating; cast to bf16 in VMEM)
                batch_spec(nhid_p),                 # z   (f32)
                const_spec((ninp_p, 4 * nhid_p)),   # Wi  [dt1,dt2,y,z]
                const_spec((nhid_p, 3 * nhid_p)),   # Wh  [dt1,dt2,y]
                const_spec((1, 3 * nhid_p)),        # b3  (bi+bh fused)
                const_spec((1, nhid_p)),            # bi_z
                const_spec((nhid_p, nhid_p)),       # Wz
                const_spec((1, nhid_p)),            # bz
            ],
            out_specs=[batch_spec(nhid_p), batch_spec(nhid_p)],
        ),
        compiler_params=pltpu.CompilerParams(
            dimension_semantics=("parallel",),
            vmem_limit_bytes=int(vmem_limit)),
        cost_estimate=cost,
        # Reuse the padded y/z state buffers for the outputs (pays off when the
        # driver keeps state in the padded (B_pad, nhid_p) layout).
        input_output_aliases={1: 0, 2: 1},
    )(x_lp, y_p, z_p, pw["wi"], pw["wh"], pw["b3"], pw["biz"], pw["wz"], pw["bz"])


def lem_cell(x, y, z, params, dt, *, bm=None, matmul_dtype=jnp.bfloat16, prepared=None):
    """Pallas LEMCell forward.  Returns (y_new, z_new) of shape (B, nhid).

    For recurrent use, call prepare_lem_weights() once and pass it via
    `prepared=` so the weight slab is not rebuilt every step."""
    B, ninp = x.shape
    nhid = y.shape[1]

    pw = prepared if prepared is not None else prepare_lem_weights(
        params, ninp, nhid, matmul_dtype)
    ninp_p, nhid_p = pw["ninp_p"], pw["nhid_p"]

    if bm is None:
        bm = _choose_bm(B, nhid_p)
    B_pad = _round_up(B, bm)

    x_lp = jnp.pad(x.astype(jnp.float32),
                   ((0, B_pad - B), (0, ninp_p - ninp))).astype(pw["matmul_dtype"])
    y_p = jnp.pad(y.astype(jnp.float32), ((0, B_pad - B), (0, nhid_p - nhid)))
    z_p = jnp.pad(z.astype(jnp.float32), ((0, B_pad - B), (0, nhid_p - nhid)))

    y_o, z_o = _lem_pallas_call(
        x_lp, y_p, z_p, pw, dt=float(dt), bm=bm,
        single_buffer=_single_buffer_supported())

    # No host sync here — caller decides when to block.
    return y_o[:B, :nhid], z_o[:B, :nhid]


# ----------------------------------------------------------------------------- reference


def lem_cell_ref(x, y, z, params, dt, matmul_dtype=None):
    """Pure-JAX reference matching the PyTorch module.  If matmul_dtype is set,
    matmul inputs are cast to it (f32 accumulation) to mirror kernel precision."""
    wi, bi, wh, bh, wz, bz = params

    def mm(a, w):
        if matmul_dtype is not None:
            a = a.astype(matmul_dtype)
            w = w.astype(matmul_dtype)
        return jnp.dot(a, w, preferred_element_type=jnp.float32)

    ti = mm(x, wi) + bi
    th = mm(y, wh) + bh
    i_dt1, i_dt2, i_z, i_y = jnp.split(ti, 4, axis=1)
    h_dt1, h_dt2, h_y = jnp.split(th, 3, axis=1)
    ms_dt_bar = dt * jax.nn.sigmoid(i_dt1 + h_dt1)
    ms_dt = dt * jax.nn.sigmoid(i_dt2 + h_dt2)
    z_new = (1.0 - ms_dt) * z + ms_dt * jnp.tanh(i_y + h_y)
    y_new = (1.0 - ms_dt_bar) * y + ms_dt_bar * jnp.tanh(mm(z_new, wz) + bz + i_z)
    return y_new, z_new


def init_params(key, ninp, nhid):
    """reset_parameters(): U(-1/sqrt(nhid), 1/sqrt(nhid)); weights stored
    transposed as (in_features, out_features)."""
    std = 1.0 / math.sqrt(nhid)
    ks = jax.random.split(key, 6)
    u = lambda k, shape: jax.random.uniform(k, shape, jnp.float32, -std, std)
    wi = u(ks[0], (ninp, 4 * nhid))
    bi = u(ks[1], (4 * nhid,))
    wh = u(ks[2], (nhid, 3 * nhid))
    bh = u(ks[3], (3 * nhid,))
    wz = u(ks[4], (nhid, nhid))
    bz = u(ks[5], (nhid,))
    return (wi, bi, wh, bh, wz, bz)


# ----------------------------------------------------------------------------- test


if __name__ == "__main__":
    B, ninp, nhid = 16, 16, 32
    dt = 0.5

    key = jax.random.PRNGKey(0)
    kx, ky, kz, kp = jax.random.split(key, 4)
    x = jax.random.normal(kx, (B, ninp), jnp.float32)
    y = jax.random.normal(ky, (B, nhid), jnp.float32)
    z = jax.random.normal(kz, (B, nhid), jnp.float32)
    params = init_params(kp, ninp, nhid)

    # Prepare weights once (recurrent drivers reuse this across steps).
    prepared = prepare_lem_weights(params, ninp, nhid)

    # --- single-step check ----------------------------------------------------
    y_new, z_new = lem_cell(x, y, z, params, dt, prepared=prepared)
    jax.block_until_ready((y_new, z_new))

    # Tight check against a precision-matched reference (bf16 matmul inputs,
    # f32 accumulation — same as the kernel).
    y_m, z_m = lem_cell_ref(x, y, z, params, dt, matmul_dtype=jnp.bfloat16)
    assert jnp.allclose(y_new, y_m, atol=2e-3, rtol=2e-3), \
        float(jnp.max(jnp.abs(y_new - y_m)))
    assert jnp.allclose(z_new, z_m, atol=2e-3, rtol=2e-3), \
        float(jnp.max(jnp.abs(z_new - z_m)))

    # Loose sanity check against the full-f32 reference.
    y_r, z_r = lem_cell_ref(x, y, z, params, dt)
    assert jnp.allclose(y_new, y_r, atol=5e-2, rtol=5e-2)
    assert jnp.allclose(z_new, z_r, atol=5e-2, rtol=5e-2)

    # --- short recurrent rollout (validates multi-step precision & weight reuse)
    T = 4
    kxs = jax.random.split(jax.random.PRNGKey(1), T)
    yk, zk = y, z
    ym, zm = y, z
    for t in range(T):
        xt = jax.random.normal(kxs[t], (B, ninp), jnp.float32)
        yk, zk = lem_cell(xt, yk, zk, params, dt, prepared=prepared)
        ym, zm = lem_cell_ref(xt, ym, zm, params, dt, matmul_dtype=jnp.bfloat16)
    jax.block_until_ready((yk, zk))
    assert jnp.allclose(yk, ym, atol=5e-3, rtol=5e-3), \
        float(jnp.max(jnp.abs(yk - ym)))
    assert jnp.allclose(zk, zm, atol=5e-3, rtol=5e-3), \
        float(jnp.max(jnp.abs(zk - zm)))

    print("KERNEL_OK")
</pallas_src>

<mosaic_0001>
module attributes {stable_mosaic.version = 11 : i64} {
  func.func @probe_kernel(%arg0: i32, %arg1: memref<8x128xf32, #tpu.memory_space<vmem>>, %arg2: memref<8x128xf32, #tpu.memory_space<vmem>>, %arg3: memref<8x128xf32, #tpu.memory_space<vmem>>) attributes {dimension_semantics = [#tpu.dimension_semantics<arbitrary>], iteration_bounds = array<i64: 2>, scalar_prefetch = 0 : i64, scratch_operands = 0 : i64, tpu.core_type = #tpu.core_type<tc>, window_params = [{pipeline_mode = #tpu.pipeline_mode<synchronous>, transform_indices = @transform_0, window_bounds = array<i64: 8, 128>}, {transform_indices = @transform_1, window_bounds = array<i64: 8, 128>}, {transform_indices = @transform_2, window_bounds = array<i64: 8, 128>}]} {
    %c0 = arith.constant 0 : index
    %c0_0 = arith.constant 0 : index
    %0 = vector.load %arg2[%c0, %c0_0] : memref<8x128xf32, #tpu.memory_space<vmem>>, vector<8x128xf32>
    %c0_1 = arith.constant 0 : index
    %c0_2 = arith.constant 0 : index
    %1 = vector.load %arg1[%c0_1, %c0_2] : memref<8x128xf32, #tpu.memory_space<vmem>>, vector<8x128xf32>
    %2 = arith.addf %0, %1 : vector<8x128xf32>
    %c0_3 = arith.constant 0 : index
    %c0_4 = arith.constant 0 : index
    %3 = vector.load %arg3[%c0_3, %c0_4] : memref<8x128xf32, #tpu.memory_space<vmem>>, vector<8x128xf32>
    tpu.vector_store %arg3[%c0_3, %c0_4], %2 {strides = array<i32>} : memref<8x128xf32, #tpu.memory_space<vmem>>, vector<8x128xf32>,
    return
  }
  func.func @transform_0(%arg0: i32) -> (i32, i32) {
    %c0_i32 = arith.constant 0 : i32
    %c0_i32_0 = arith.constant 0 : i32
    %c0_i32_1 = arith.constant 0 : i32
    return %c0_i32, %c0_i32_0 : i32, i32
  }
  func.func @transform_1(%arg0: i32) -> (i32, i32) {
    %c0_i32 = arith.constant 0 : i32
    %c0_i32_0 = arith.constant 0 : i32
    return %arg0, %c0_i32 : i32, i32
  }
  func.func @transform_2(%arg0: i32) -> (i32, i32) {
    %c0_i32 = arith.constant 0 : i32
    %c0_i32_0 = arith.constant 0 : i32
    return %arg0, %c0_i32 : i32, i32
  }
}

module attributes {stable_mosaic.version = 11 : i64} {
  func.func @_lem_kernel(%arg0: i32, %arg1: memref<16x16xbf16, #tpu.memory_space<vmem>>, %arg2: memref<16x128xf32, #tpu.memory_space<vmem>>, %arg3: memref<16x128xf32, #tpu.memory_space<vmem>>, %arg4: memref<16x512xbf16, #tpu.memory_space<vmem>>, %arg5: memref<128x384xbf16, #tpu.memory_space<vmem>>, %arg6: memref<1x384xf32, #tpu.memory_space<vmem>>, %arg7: memref<1x128xf32, #tpu.memory_space<vmem>>, %arg8: memref<128x128xbf16, #tpu.memory_space<vmem>>, %arg9: memref<1x128xf32, #tpu.memory_space<vmem>>, %arg10: memref<16x128xf32, #tpu.memory_space<vmem>>, %arg11: memref<16x128xf32, #tpu.memory_space<vmem>>) attributes {dimension_semantics = [#tpu.dimension_semantics<parallel>], iteration_bounds = array<i64: 1>, scalar_prefetch = 0 : i64, scratch_operands = 0 : i64, tpu.core_type = #tpu.core_type<tc>, window_params = [{transform_indices = @transform_0, window_bounds = array<i64: 16, 16>}, {transform_indices = @transform_1, window_bounds = array<i64: 16, 128>}, {transform_indices = @transform_2, window_bounds = array<i64: 16, 128>}, {pipeline_mode = #tpu.pipeline_mode<synchronous>, transform_indices = @transform_3, window_bounds = array<i64: 16, 512>}, {pipeline_mode = #tpu.pipeline_mode<synchronous>, transform_indices = @transform_4, window_bounds = array<i64: 128, 384>}, {pipeline_mode = #tpu.pipeline_mode<synchronous>, transform_indices = @transform_5, window_bounds = array<i64: 1, 384>}, {pipeline_mode = #tpu.pipeline_mode<synchronous>, transform_indices = @transform_6, window_bounds = array<i64: 1, 128>}, {pipeline_mode = #tpu.pipeline_mode<synchronous>, transform_indices = @transform_7, window_bounds = array<i64: 128, 128>}, {pipeline_mode = #tpu.pipeline_mode<synchronous>, transform_indices = @transform_8, window_bounds = array<i64: 1, 128>}, {transform_indices = @transform_9, window_bounds = array<i64: 16, 128>}, {transform_indices = @transform_10, window_bounds = array<i64: 16, 128>}]} {
    %c0 = arith.constant 0 : index
    %c0_0 = arith.constant 0 : index
    %0 = vector.load %arg2[%c0, %c0_0] : memref<16x128xf32, #tpu.memory_space<vmem>>, vector<16x128xf32>
    %c0_1 = arith.constant 0 : index
    %c0_2 = arith.constant 0 : index
    %1 = vector.load %arg3[%c0_1, %c0_2] : memref<16x128xf32, #tpu.memory_space<vmem>>, vector<16x128xf32>
    %c0_3 = arith.constant 0 : index
    %c0_4 = arith.constant 0 : index
    %2 = vector.load %arg1[%c0_3, %c0_4] : memref<16x16xbf16, #tpu.memory_space<vmem>>, vector<16x16xbf16>
    %3 = arith.truncf %0 : vector<16x128xf32> to vector<16x128xbf16>
    %c0_5 = arith.constant 0 : index
    %c0_6 = arith.constant 0 : index
    %4 = vector.load %arg4[%c0_5, %c0_6] : memref<16x512xbf16, #tpu.memory_space<vmem>>, vector<16x512xbf16>
    %cst = arith.constant dense<0.000000e+00> : vector<16x512xf32>
    %5 = tpu.matmul %2, %4, %cst {dimension_numbers = #tpu.dot_dimension_numbers<[1], [0], [0], [1], [0, 0, 1, 1], [], []>} : vector<16x16xbf16>, vector<16x512xbf16>, vector<16x512xf32> -> vector<16x512xf32>
    %c0_7 = arith.constant 0 : index
    %c0_8 = arith.constant 0 : index
    %6 = vector.load %arg5[%c0_7, %c0_8] : memref<128x384xbf16, #tpu.memory_space<vmem>>, vector<128x384xbf16>
    %cst_9 = arith.constant dense<0.000000e+00> : vector<16x384xf32>
    %7 = tpu.matmul %3, %6, %cst_9 {dimension_numbers = #tpu.dot_dimension_numbers<[1], [0], [0], [1], [0, 0, 1, 1], [], []>} : vector<16x128xbf16>, vector<128x384xbf16>, vector<16x384xf32> -> vector<16x384xf32>
    %8 = vector.extract_strided_slice %5 {offsets = [0, 0], sizes = [16, 384], strides = [1, 1]} : vector<16x512xf32> to vector<16x384xf32>
    %9 = arith.addf %8, %7 : vector<16x384xf32>
    %c0_10 = arith.constant 0 : index
    %c0_11 = arith.constant 0 : index
    %10 = vector.load %arg6[%c0_10, %c0_11] : memref<1x384xf32, #tpu.memory_space<vmem>>, vector<1x384xf32>
    %11 = vector.broadcast %10 : vector<1x384xf32> to vector<16x384xf32>
    %12 = arith.addf %9, %11 : vector<16x384xf32>
    %13 = vector.extract_strided_slice %5 {offsets = [0, 384], sizes = [16, 128], strides = [1, 1]} : vector<16x512xf32> to vector<16x128xf32>
    %c0_12 = arith.constant 0 : index
    %c0_13 = arith.constant 0 : index
    %14 = vector.load %arg7[%c0_12, %c0_13] : memref<1x128xf32, #tpu.memory_space<vmem>>, vector<1x128xf32>
    %15 = vector.broadcast %14 : vector<1x128xf32> to vector<16x128xf32>
    %16 = arith.addf %13, %15 : vector<16x128xf32>
    %17 = vector.extract_strided_slice %12 {offsets = [0, 0], sizes = [16, 128], strides = [1, 1]} : vector<16x384xf32> to vector<16x128xf32>
    %18 = vector.extract_strided_slice %12 {offsets = [0, 128], sizes = [16, 128], strides = [1, 1]} : vector<16x384xf32> to vector<16x128xf32>
    %19 = vector.extract_strided_slice %12 {offsets = [0, 256], sizes = [16, 128], strides = [1, 1]} : vector<16x384xf32> to vector<16x128xf32>
    %20 = arith.negf %17 : vector<16x128xf32>
    %21 = math.exp %20 : vector<16x128xf32>
    %cst_14 = arith.constant 1.000000e+00 : f32
    %22 = vector.broadcast %cst_14 : f32 to vector<16x128xf32>
    %23 = arith.addf %22, %21 : vector<16x128xf32>
    %24 = arith.divf %22, %23 : vector<16x128xf32>
    %cst_15 = arith.constant 5.000000e-01 : f32
    %25 = vector.broadcast %cst_15 : f32 to vector<16x128xf32>
    %26 = arith.mulf %25, %24 : vector<16x128xf32>
    %27 = arith.negf %18 : vector<16x128xf32>
    %28 = math.exp %27 : vector<16x128xf32>
    %cst_16 = arith.constant 1.000000e+00 : f32
    %29 = vector.broadcast %cst_16 : f32 to vector<16x128xf32>
    %30 = arith.addf %29, %28 : vector<16x128xf32>
    %31 = arith.divf %29, %30 : vector<16x128xf32>
    %cst_17 = arith.constant 5.000000e-01 : f32
    %32 = vector.broadcast %cst_17 : f32 to vector<16x128xf32>
    %33 = arith.mulf %32, %31 : vector<16x128xf32>
    %cst_18 = arith.constant 1.000000e+00 : f32
    %34 = vector.broadcast %cst_18 : f32 to vector<16x128xf32>
    %35 = arith.subf %34, %33 : vector<16x128xf32>
    %36 = arith.mulf %35, %1 : vector<16x128xf32>
    %37 = math.tanh %19 : vector<16x128xf32>
    %38 = arith.mulf %33, %37 : vector<16x128xf32>
    %39 = arith.addf %36, %38 : vector<16x128xf32>
    %40 = arith.truncf %39 : vector<16x128xf32> to vector<16x128xbf16>
    %c0_19 = arith.constant 0 : index
    %c0_20 = arith.constant 0 : index
    %41 = vector.load %arg8[%c0_19, %c0_20] : memref<128x128xbf16, #tpu.memory_space<vmem>>, vector<128x128xbf16>
    %cst_21 = arith.constant dense<0.000000e+00> : vector<16x128xf32>
    %42 = tpu.matmul %40, %41, %cst_21 {dimension_numbers = #tpu.dot_dimension_numbers<[1], [0], [0], [1], [0, 0, 1, 1], [], []>} : vector<16x128xbf16>, vector<128x128xbf16>, vector<16x128xf32> -> vector<16x128xf32>
    %c0_22 = arith.constant 0 : index
    %c0_23 = arith.constant 0 : index
    %43 = vector.load %arg9[%c0_22, %c0_23] : memref<1x128xf32, #tpu.memory_space<vmem>>, vector<1x128xf32>
    %44 = vector.broadcast %43 : vector<1x128xf32> to vector<16x128xf32>
    %45 = arith.addf %42, %44 : vector<16x128xf32>
    %cst_24 = arith.constant 1.000000e+00 : f32
    %46 = vector.broadcast %cst_24 : f32 to vector<16x128xf32>
    %47 = arith.subf %46, %26 : vector<16x128xf32>
    %48 = arith.mulf %47, %0 : vector<16x128xf32>
    %49 = arith.addf %45, %16 : vector<16x128xf32>
    %50 = math.tanh %49 : vector<16x128xf32>
    %51 = arith.mulf %26, %50 : vector<16x128xf32>
    %52 = arith.addf %48, %51 : vector<16x128xf32>
    %c0_25 = arith.constant 0 : index
    %c0_26 = arith.constant 0 : index
    %53 = vector.load %arg10[%c0_25, %c0_26] : memref<16x128xf32, #tpu.memory_space<vmem>>, vector<16x128xf32>
    tpu.vector_store %arg10[%c0_25, %c0_26], %52 {strides = array<i32>} : memref<16x128xf32, #tpu.memory_space<vmem>>, vector<16x128xf32>,
    %c0_27 = arith.constant 0 : index
    %c0_28 = arith.constant 0 : index
    %54 = vector.load %arg11[%c0_27, %c0_28] : memref<16x128xf32, #tpu.memory_space<vmem>>, vector<16x128xf32>
    tpu.vector_store %arg11[%c0_27, %c0_28], %39 {strides = array<i32>} : memref<16x128xf32, #tpu.memory_space<vmem>>, vector<16x128xf32>,
    return
  }
  func.func @transform_0(%arg0: i32) -> (i32, i32) {
    %c0_i32 = arith.constant 0 : i32
    %c0_i32_0 = arith.constant 0 : i32
    return %arg0, %c0_i32 : i32, i32
  }
  func.func @transform_1(%arg0: i32) -> (i32, i32) {
    %c0_i32 = arith.constant 0 : i32
    %c0_i32_0 = arith.constant 0 : i32
    return %arg0, %c0_i32 : i32, i32
  }
  func.func @transform_2(%arg0: i32) -> (i32, i32) {
    %c0_i32 = arith.constant 0 : i32
    %c0_i32_0 = arith.constant 0 : i32
    return %arg0, %c0_i32 : i32, i32
  }
  func.func @transform_3(%arg0: i32) -> (i32, i32) {
    %c0_i32 = arith.constant 0 : i32
    %c0_i32_0 = arith.constant 0 : i32
    %c0_i32_1 = arith.constant 0 : i32
    return %c0_i32, %c0_i32_0 : i32, i32
  }
  func.func @transform_4(%arg0: i32) -> (i32, i32) {
    %c0_i32 = arith.constant 0 : i32
    %c0_i32_0 = arith.constant 0 : i32
    %c0_i32_1 = arith.constant 0 : i32
    return %c0_i32, %c0_i32_0 : i32, i32
  }
  func.func @transform_5(%arg0: i32) -> (i32, i32) {
    %c0_i32 = arith.constant 0 : i32
    %c0_i32_0 = arith.constant 0 : i32
    %c0_i32_1 = arith.constant 0 : i32
    return %c0_i32, %c0_i32_0 : i32, i32
  }
  func.func @transform_6(%arg0: i32) -> (i32, i32) {
    %c0_i32 = arith.constant 0 : i32
    %c0_i32_0 = arith.constant 0 : i32
    %c0_i32_1 = arith.constant 0 : i32
    return %c0_i32, %c0_i32_0 : i32, i32
  }
  func.func @transform_7(%arg0: i32) -> (i32, i32) {
    %c0_i32 = arith.constant 0 : i32
    %c0_i32_0 = arith.constant 0 : i32
    %c0_i32_1 = arith.constant 0 : i32
    return %c0_i32, %c0_i32_0 : i32, i32
  }
  func.func @transform_8(%arg0: i32) -> (i32, i32) {
    %c0_i32 = arith.constant 0 : i32
    %c0_i32_0 = arith.constant 0 : i32
    %c0_i32_1 = arith.constant 0 : i32
    return %c0_i32, %c0_i32_0 : i32, i32
  }
  func.func @transform_9(%arg0: i32) -> (i32, i32) {
    %c0_i32 = arith.constant 0 : i32
    %c0_i32_0 = arith.constant 0 : i32
    return %arg0, %c0_i32 : i32, i32
  }
  func.func @transform_10(%arg0: i32) -> (i32, i32) {
    %c0_i32 = arith.constant 0 : i32
    %c0_i32_0 = arith.constant 0 : i32
    return %arg0, %c0_i32 : i32, i32
  }
}

</mosaic_0001>

<llo_original>
// kernel: tpu_custom_call.1
$region0: #{tpu_custom_call.1}
  #allocation0 [shape = 'u32[]', space=smem, size = 0x4, offset = 0x4, fixed_abs, tag = 'smem constant byte address 0x4 - core index']
  #allocation1 [shape = 'u32[144,128]{1,0:T(1,128)}', space=vmem, size = 0x12000, scoped, tag = 'internal scratch']
  %s0 = inlined_call_operand.hbm [shape: f32[8,128], index: 0, kind: input, shape index: {}]
  %s1 = inlined_call_operand.hbm [shape: f32[16,128], index: 1, kind: input, shape index: {}]
  %s2 = inlined_call_operand.hbm [shape: f32[16,128], index: 2, kind: output, shape index: {}]
  %s3 = sld [smem:[#allocation0]]
  $region49: #{tpu_custom_call.1} parent=0
    _
  %s5 = ssub.s32 1, %s3
  %s6 = scalar_select 0, %s5, %s3
  $region1: #{tpu_custom_call.1} parent=0
    #allocation2 [shape = 'u8[4096]{0}', space=vmem, size = 0x1000, scoped, tag = 'input window, operand 0, single buffered']
    #allocation3 [shape = 's32[2]{0}', space=sflag, size = 0x8, scoped, tag = 'scoped memory for tpu_custom_call.1']
    #allocation4 [shape = 's32[2]{0}', space=sflag, size = 0x8, scoped, tag = 'scoped memory for tpu_custom_call.1']
    #allocation5 [shape = 'u8[8192]{0}', space=vmem, size = 0x2000, scoped, tag = 'input window, operand 1']
    #allocation6 [shape = 's32[2]{0}', space=sflag, size = 0x8, scoped, tag = 'scoped memory for tpu_custom_call.1']
    #allocation7 [shape = 'u8[8192]{0}', space=vmem, size = 0x2000, scoped, tag = 'output window, operand 0']
    %7 = vsyncpa [#allocation3], 0
    %8 = vsyncpa [#allocation6], 0
    %s9 = scalar_lea.sflag [#allocation6], 1
    %10 = vsyncpa %s9, 0
    %11 = vsyncpa [#allocation4], 0
    %s12 = scalar_lea.sflag [#allocation4], 1
    %13 = vsyncpa %s12, 0
    loop: start=0, step=1, limit=4
    $region2: #{tpu_custom_call.1} parent=1 // loop_pre_header
      _
    $region3: #{tpu_custom_call.1} parent=1 // loop_header
      %s15 = sphi 0, %s19
      %p16 = scmp.ge.s32.totalorder %s15, 4
      %s23 = sphi 0, %s23
      %s25 = sphi 0, %s23
      %s26 = sphi 0, %s25
      %s40 = sphi 0, %s26
      %s46 = sphi 0, %s48
      %s49 = sphi 0, %s46
      %s50 = sphi 0, %s49
      %s66 = sphi 0, %s50
      %s72 = sphi 0, %s74
      %s75 = sphi 0, %s72
      %s76 = sphi 0, %s75
      %s92 = sphi 0, %s76
    $region4: #{tpu_custom_call.1} parent=1 // loop_header_branch
      %18 = sbr.rel (%p16) target = $region8
    $region5: #{tpu_custom_call.1} parent=1 // loop_body
      %s20 = ssub.s32 %s15, 1
      %s21 = ssub.s32 %s15, 2
      %s22 = sadd.s32 %s15, 1
      %s24 = sadd.s32 %s23, 1
      %p27 = scmp.eq.s32.totalorder %s15, 1
      %p28 = scmp.ne.s32.totalorder %s23, %s25
      %p29 = scmp.eq.s32.totalorder %s15, 0
      %p30 = por %p28, %p29
      %p31 = scmp.ne.s32.totalorder %s23, %s25
      %p32 = scmp.eq.s32.totalorder %s20, 1
      %p33 = por %p31, %p32
      %p34 = scmp.ne.s32.totalorder %s25, %s26
      %p35 = scmp.eq.s32.totalorder %s20, 0
      %p36 = por %p34, %p35
      %p37 = scmp.ne.s32.totalorder %s25, %s26
      %p38 = scmp.eq.s32.totalorder %s21, 1
      %p39 = por %p37, %p38
      %p41 = scmp.ne.s32.totalorder %s26, %s40
      %p42 = scmp.eq.s32.totalorder %s21, 0
      %p43 = por %p41, %p42
      %s44 = ssub.s32 %s15, %s22
      %p45 = scmp.eq.s32.totalorder %s44, 0
      %s47 = sadd.s32 %s46, 1
      %s48 = scalar_select %p45, %s46, %s47
      %p51 = pneg %p45
      %p52 = scmp.eq.s32.totalorder %s15, 1
      %p53 = por %p51, %p52
      %p54 = scmp.ne.s32.totalorder %s46, %s49
      %p55 = scmp.eq.s32.totalorder %s15, 0
      %p56 = por %p54, %p55
      %p57 = scmp.ne.s32.totalorder %s46, %s49
      %p58 = scmp.eq.s32.totalorder %s20, 1
      %p59 = por %p57, %p58
      %p60 = scmp.ne.s32.totalorder %s49, %s50
      %p61 = scmp.eq.s32.totalorder %s20, 0
      %p62 = por %p60, %p61
      %p63 = scmp.ne.s32.totalorder %s49, %s50
      %p64 = scmp.eq.s32.totalorder %s21, 1
      %p65 = por %p63, %p64
      %p67 = scmp.ne.s32.totalorder %s50, %s66
      %p68 = scmp.eq.s32.totalorder %s21, 0
      %p69 = por %p67, %p68
      %s70 = ssub.s32 %s15, %s22
      %p71 = scmp.eq.s32.totalorder %s70, 0
      %s73 = sadd.s32 %s72, 1
      %s74 = scalar_select %p71, %s72, %s73
      %p77 = pneg %p71
      %p78 = scmp.eq.s32.totalorder %s15, 1
      %p79 = por %p77, %p78
      %p80 = scmp.ne.s32.totalorder %s72, %s75
      %p81 = scmp.eq.s32.totalorder %s15, 0
      %p82 = por %p80, %p81
      %p83 = scmp.ne.s32.totalorder %s72, %s75
      %p84 = scmp.eq.s32.totalorder %s20, 1
      %p85 = por %p83, %p84
      %p86 = scmp.ne.s32.totalorder %s75, %s76
      %p87 = scmp.eq.s32.totalorder %s20, 0
      %p88 = por %p86, %p87
      %p89 = scmp.ne.s32.totalorder %s75, %s76
      %p90 = scmp.eq.s32.totalorder %s21, 1
      %p91 = por %p89, %p90
      %p93 = scmp.ne.s32.totalorder %s76, %s92
      %p94 = scmp.eq.s32.totalorder %s21, 0
      %p95 = por %p93, %p94
      %p96 = scmp.le.s32.totalorder 1, %s15
      %p97 = scmp.lt.s32.totalorder %s15, 3
      %p98 = pnand %p96, %p97
      %p99 = pneg %p98
      // Predicated region
      $region9: #{tpu_custom_call.1} parent=5 // pred_check
        _
      $region10: #{tpu_custom_call.1} parent=5 // pred_check_branch
        %101 = sbr.rel (%p98) target = $region12
      $region11: #{tpu_custom_call.1} parent=5 // pred_region
        %s102 = ssub.s32 %s15, 1
        // Predicated region
        $region13: #{tpu_custom_call.1} parent=11 // pred_check
          %p103 = pneg %p36
        $region14: #{tpu_custom_call.1} parent=11 // pred_check_branch
          %105 = sbr.rel (%p103) target = $region16
        $region15: #{tpu_custom_call.1} parent=11 // pred_region
          %s107 = ssub.s32 128, 128
          %108 = vsyncadd [#allocation3], %s107
          %s110 = sshll.u32 [#allocation2], 4
          %s111 = int_to_ptr.vmem [resolvable:$true] %s110
          %113 = dma.hbm_to_vmem [thread:$0]  %s0, 128, %s111, [#allocation3]
        $region16: #{tpu_custom_call.1} parent=11 // pred_fallthru
          _
      $region12: #{tpu_custom_call.1} parent=5 // pred_fallthru
        _
      %p114 = scmp.lt.s32.totalorder %s15, 2
      // Predicated region
      $region17: #{tpu_custom_call.1} parent=5 // pred_check
        %p115 = pneg %p114
      $region18: #{tpu_custom_call.1} parent=5 // pred_check_branch
        %117 = sbr.rel (%p115) target = $region20
      $region19: #{tpu_custom_call.1} parent=5 // pred_region
        // Predicated region
        $region21: #{tpu_custom_call.1} parent=19 // pred_check
          %p118 = pneg %p56
        $region22: #{tpu_custom_call.1} parent=19 // pred_check_branch
          %120 = sbr.rel (%p118) target = $region24
        $region23: #{tpu_custom_call.1} parent=19 // pred_region
          %s121 = sand.u32 %s46, 1
          %s122 = scalar_lea.sflag [#allocation6], %s121
          %s123 = sand.u32 %s46, 1
          %s124 = smul.addr %s123, 8
          %s125 = scalar_lea.vmem [#allocation5], %s124
          %s127 = ssub.s32 128, 128
          %128 = vsyncadd %s122, %s127
          %s129 = smul.addr %s15, 128
          %s130 = scalar_lea.hbm %s1, %s129
          %s132 = sshll.u32 %s125, 4
          %s133 = int_to_ptr.vmem [resolvable:$true] %s132
          %135 = dma.hbm_to_vmem [thread:$0]  %s130, 128, %s133, %s122
        $region24: #{tpu_custom_call.1} parent=19 // pred_fallthru
          _
      $region20: #{tpu_custom_call.1} parent=5 // pred_fallthru
        _
      %p136 = scmp.le.s32.totalorder 1, %s15
      %p137 = scmp.lt.s32.totalorder %s15, 3
      %p138 = pnand %p136, %p137
      %p139 = pneg %p138
      // Predicated region
      $region25: #{tpu_custom_call.1} parent=5 // pred_check
        _
      $region26: #{tpu_custom_call.1} parent=5 // pred_check_branch
        %141 = sbr.rel (%p138) target = $region28
      $region27: #{tpu_custom_call.1} parent=5 // pred_region
        %s142 = ssub.s32 %s15, 1
        // Predicated region
        $region29: #{tpu_custom_call.1} parent=27 // pred_check
          %p143 = pneg %p36
        $region30: #{tpu_custom_call.1} parent=27 // pred_check_branch
          %145 = sbr.rel (%p143) target = $region32
        $region31: #{tpu_custom_call.1} parent=27 // pred_region
          %146 = dma.done [#allocation3], 128
        $region32: #{tpu_custom_call.1} parent=27 // pred_fallthru
          _
        %s147 = sand.u32 %s49, 1
        %s148 = scalar_lea.sflag [#allocation6], %s147
        %s149 = sand.u32 %s49, 1
        %s150 = smul.addr %s149, 8
        %s151 = scalar_lea.vmem [#allocation5], %s150
        // Predicated region
        $region33: #{tpu_custom_call.1} parent=27 // pred_check
          %p152 = pneg %p62
        $region34: #{tpu_custom_call.1} parent=27 // pred_check_branch
          %154 = sbr.rel (%p152) target = $region36
        $region35: #{tpu_custom_call.1} parent=27 // pred_region
          %155 = dma.done %s148, 128
        $region36: #{tpu_custom_call.1} parent=27 // pred_fallthru
          _
        %p156 = pneg %p36
        %p157 = pneg %p33
        %s158 = sand.u32 %s49, 1
        %s159 = scalar_lea.sflag [#allocation6], %s158
        %s160 = sand.u32 %s49, 1
        %s161 = smul.addr %s160, 8
        %s162 = scalar_lea.vmem [#allocation5], %s161
        %p163 = pneg %p62
        %p164 = pneg %p59
        %p165 = pneg %p88
        %p166 = pneg %p85
        %s167 = sand.u32 %s75, 1
        %s168 = scalar_lea.sflag [#allocation4], %s167
        %s169 = sand.u32 %s75, 1
        %s170 = smul.addr %s169, 8
        %s171 = scalar_lea.vmem [#allocation7], %s170
        %v172 = vld [vmem:[%s151] sm:$0xff]
        %v173 = vld [vmem:[#allocation2] sm:$0xff]
        %v174 = vadd.f32 %v172, %v173
        %175 = vst [vmem:[%s171] sm:$0xff] %v174
        %s176 = sand.u32 %s75, 1
        %s177 = scalar_lea.sflag [#allocation4], %s176
        %s178 = sand.u32 %s75, 1
        %s179 = smul.addr %s178, 8
        %s180 = scalar_lea.vmem [#allocation7], %s179
        // Predicated region
        $region37: #{tpu_custom_call.1} parent=27 // pred_check
          %p181 = pneg %p85
        $region38: #{tpu_custom_call.1} parent=27 // pred_check_branch
          %183 = sbr.rel (%p181) target = $region40
        $region39: #{tpu_custom_call.1} parent=27 // pred_region
          %s185 = ssub.s32 128, 128
          %186 = vsyncadd %s177, %s185
          %s187 = smul.addr %s20, 128
          %s188 = scalar_lea.hbm %s2, %s187
          %s190 = sshll.u32 %s180, 4
          %s191 = int_to_ptr.vmem [resolvable:$true] %s190
          %193 = dma.vmem_to_hbm [thread:$0]  %s191, 128, %s188, %s177
        $region40: #{tpu_custom_call.1} parent=27 // pred_fallthru
          _
      $region28: #{tpu_custom_call.1} parent=5 // pred_fallthru
        _
      %p194 = scmp.le.s32.totalorder 2, %s15
      // Predicated region
      $region41: #{tpu_custom_call.1} parent=5 // pred_check
        %p195 = pneg %p194
      $region42: #{tpu_custom_call.1} parent=5 // pred_check_branch
        %197 = sbr.rel (%p195) target = $region44
      $region43: #{tpu_custom_call.1} parent=5 // pred_region
        %s198 = ssub.s32 %s15, 2
        // Predicated region
        $region45: #{tpu_custom_call.1} parent=43 // pred_check
          %p199 = pneg %p91
        $region46: #{tpu_custom_call.1} parent=43 // pred_check_branch
          %201 = sbr.rel (%p199) target = $region48
        $region47: #{tpu_custom_call.1} parent=43 // pred_region
          %s202 = sand.u32 %s76, 1
          %s203 = scalar_lea.sflag [#allocation4], %s202
          %s204 = sand.u32 %s76, 1
          %s205 = smul.addr %s204, 8
          %s206 = scalar_lea.vmem [#allocation7], %s205
          %207 = dma.done %s203, 128
        $region48: #{tpu_custom_call.1} parent=43 // pred_fallthru
          _
      $region44: #{tpu_custom_call.1} parent=5 // pred_fallthru
        _
    $region6: #{tpu_custom_call.1} parent=1 // loop_footer
      %s19 = sadd.s32 1, %s15
    $region7: #{tpu_custom_call.1} parent=1 // loop_footer_branch
      %14 = sbr.rel target = $region3
    $region8: #{tpu_custom_call.1} parent=1 // loop_exit
      _
    %208 = vsyncpa [#allocation3], 1
    %s209 = scalar_lea.sflag [#allocation3], 1
    %210 = vsyncpa %s209, 1
    %211 = vsyncpa [#allocation6], 1
    %s212 = scalar_lea.sflag [#allocation6], 1
    %213 = vsyncpa %s212, 1
    %214 = vsyncpa [#allocation4], 1
    %s215 = scalar_lea.sflag [#allocation4], 1
    %216 = vsyncpa %s215, 1

// kernel: tpu_custom_call.1
$region0: #{tpu_custom_call.1}
  #allocation0 [shape = 'u32[]', space=smem, size = 0x4, offset = 0x4, fixed_abs, tag = 'smem constant byte address 0x4 - core index']
  #allocation1 [shape = 'u32[144,128]{1,0:T(1,128)}', space=vmem, size = 0x12000, scoped, tag = 'internal scratch']
  %s0 = inlined_call_operand.vmem [shape: bf16[16,16], index: 0, kind: input, shape index: {}]
  %s1 = inlined_call_operand.hbm [shape: f32[16,128], index: 1, kind: input, shape index: {}, may-alias: {1,9}]
  %s2 = inlined_call_operand.hbm [shape: f32[16,128], index: 2, kind: input, shape index: {}, may-alias: {2,10}]
  %s3 = inlined_call_operand.hbm [shape: bf16[16,512], index: 3, kind: input, shape index: {}]
  %s4 = inlined_call_operand.hbm [shape: bf16[128,384], index: 4, kind: input, shape index: {}]
  %s5 = inlined_call_operand.hbm [shape: f32[1,384], index: 5, kind: input, shape index: {}]
  %s6 = inlined_call_operand.vmem [shape: f32[1,128], index: 6, kind: input, shape index: {}]
  %s7 = inlined_call_operand.vmem [shape: bf16[128,128], index: 7, kind: input, shape index: {}]
  %s8 = inlined_call_operand.vmem [shape: f32[1,128], index: 8, kind: input, shape index: {}]
  %s9 = inlined_call_operand.hbm [shape: f32[16,128], index: 9, kind: output, shape index: {0}, may-alias: {1,9}]
  %s10 = inlined_call_operand.hbm [shape: f32[16,128], index: 10, kind: output, shape index: {1}, may-alias: {2,10}]
  %11 = xla_tuple %s9, %s10
  %s12 = sld [smem:[#allocation0]]
  $region74: #{tpu_custom_call.1} parent=0
    _
  %s14 = ssub.s32 1, %s12
  %s15 = scalar_select 0, %s14, %s12
  $region1: #{tpu_custom_call.1} parent=0
    #allocation2 [shape = 'u8[8192]{0}', space=vmem, size = 0x2000, scoped, tag = 'input window, operand 1, single buffered']
    #allocation3 [shape = 's32[1]{0}', space=sflag, size = 0x4, scoped, tag = 'scoped memory for tpu_custom_call.1']
    #allocation4 [shape = 's32[1]{0}', space=sflag, size = 0x4, scoped, tag = 'scoped memory for tpu_custom_call.1']
    #allocation5 [shape = 'u8[8192]{0}', space=vmem, size = 0x2000, scoped, tag = 'input window, operand 2, single buffered']
    #allocation6 [shape = 's32[1]{0}', space=sflag, size = 0x4, scoped, tag = 'scoped memory for tpu_custom_call.1']
    #allocation7 [shape = 'u8[16384]{0}', space=vmem, size = 0x4000, scoped, tag = 'input window, operand 3, single buffered']
    #allocation8 [shape = 'u8[98304]{0}', space=vmem, size = 0x18000, scoped, tag = 'input window, operand 4, single buffered']
    #allocation9 [shape = 's32[1]{0}', space=sflag, size = 0x4, scoped, tag = 'scoped memory for tpu_custom_call.1']
    #allocation10 [shape = 'u8[1536]{0}', space=vmem, size = 0x800, scoped, tag = 'input window, operand 5, single buffered']
    #allocation11 [shape = 'u8[8192]{0}', space=vmem, size = 0x2000, scoped, tag = 'output window, operand 0, single buffered']
    #allocation12 [shape = 'u8[8192]{0}', space=vmem, size = 0x2000, scoped, tag = 'output window, operand 1, single buffered']
    #allocation13 [shape = 's32[1]{0}', space=sflag, size = 0x4, scoped, tag = 'scoped memory for tpu_custom_call.1']
    %16 = vsyncpa [#allocation3], 0
    %17 = vsyncpa [#allocation6], 0
    %18 = vsyncpa [#allocation9], 0
    %19 = vsyncpa [#allocation4], 0
    %20 = vsyncpa [#allocation13], 0
    // Predicated region
    $region2: #{tpu_custom_call.1} parent=1 // pred_check
      _
    $region3: #{tpu_custom_call.1} parent=1 // pred_check_branch
      %22 = sbr.rel (0) target = $region5
    $region4: #{tpu_custom_call.1} parent=1 // pred_region
      _
    $region5: #{tpu_custom_call.1} parent=1 // pred_fallthru
      _
    // Predicated region
    $region6: #{tpu_custom_call.1} parent=1 // pred_check
      _
    $region7: #{tpu_custom_call.1} parent=1 // pred_check_branch
      %24 = sbr.rel (0) target = $region9
    $region8: #{tpu_custom_call.1} parent=1 // pred_region
      %s26 = ssub.s32 256, 256
      %27 = vsyncadd [#allocation3], %s26
      %s28 = sshll.u32 [#allocation2], 4
      %s29 = int_to_ptr.vmem [resolvable:$true] %s28
      %34 = dma.hbm_to_vmem [thread:$0]  %s1, 256, %s29, [#allocation3], 128, 128, 8
    $region9: #{tpu_custom_call.1} parent=1 // pred_fallthru
      _
    // Predicated region
    $region10: #{tpu_custom_call.1} parent=1 // pred_check
      _
    $region11: #{tpu_custom_call.1} parent=1 // pred_check_branch
      %36 = sbr.rel (0) target = $region13
    $region12: #{tpu_custom_call.1} parent=1 // pred_region
      %s38 = ssub.s32 256, 256
      %39 = vsyncadd [#allocation6], %s38
      %s40 = sshll.u32 [#allocation5], 4
      %s41 = int_to_ptr.vmem [resolvable:$true] %s40
      %46 = dma.hbm_to_vmem [thread:$0]  %s2, 256, %s41, [#allocation6], 128, 128, 8
    $region13: #{tpu_custom_call.1} parent=1 // pred_fallthru
      _
    // Predicated region
    $region14: #{tpu_custom_call.1} parent=1 // pred_check
      _
    $region15: #{tpu_custom_call.1} parent=1 // pred_check_branch
      %48 = sbr.rel (0) target = $region17
    $region16: #{tpu_custom_call.1} parent=1 // pred_region
      %s50 = ssub.s32 512, 512
      %51 = vsyncadd [#allocation6], %s50
      %s52 = sshll.u32 [#allocation7], 4
      %s53 = int_to_ptr.vmem [resolvable:$true] %s52
      %58 = dma.hbm_to_vmem [thread:$0]  %s3, 512, %s53, [#allocation6], 256, 256, 16
    $region17: #{tpu_custom_call.1} parent=1 // pred_fallthru
      _
    // Predicated region
    $region18: #{tpu_custom_call.1} parent=1 // pred_check
      _
    $region19: #{tpu_custom_call.1} parent=1 // pred_check_branch
      %60 = sbr.rel (0) target = $region21
    $region20: #{tpu_custom_call.1} parent=1 // pred_region
      %s62 = ssub.s32 3072, 3072
      %63 = vsyncadd [#allocation9], %s62
      %s64 = sshll.u32 [#allocation8], 4
      %s65 = int_to_ptr.vmem [resolvable:$true] %s64
      %70 = dma.hbm_to_vmem [thread:$0]  %s4, 3072, %s65, [#allocation9], 192, 192, 12
    $region21: #{tpu_custom_call.1} parent=1 // pred_fallthru
      _
    // Predicated region
    $region22: #{tpu_custom_call.1} parent=1 // pred_check
      _
    $region23: #{tpu_custom_call.1} parent=1 // pred_check_branch
      %72 = sbr.rel (0) target = $region25
    $region24: #{tpu_custom_call.1} parent=1 // pred_region
      %s74 = ssub.s32 48, 48
      %75 = vsyncadd [#allocation9], %s74
      %s77 = sshll.u32 [#allocation10], 4
      %s78 = int_to_ptr.vmem [resolvable:$true] %s77
      %80 = dma.hbm_to_vmem [thread:$0]  %s5, 48, %s78, [#allocation9]
    $region25: #{tpu_custom_call.1} parent=1 // pred_fallthru
      _
    // Predicated region
    $region26: #{tpu_custom_call.1} parent=1 // pred_check
      _
    $region27: #{tpu_custom_call.1} parent=1 // pred_check_branch
      %82 = sbr.rel (0) target = $region29
    $region28: #{tpu_custom_call.1} parent=1 // pred_region
      _
    $region29: #{tpu_custom_call.1} parent=1 // pred_fallthru
      _
    // Predicated region
    $region30: #{tpu_custom_call.1} parent=1 // pred_check
      _
    $region31: #{tpu_custom_call.1} parent=1 // pred_check_branch
      %84 = sbr.rel (0) target = $region33
    $region32: #{tpu_custom_call.1} parent=1 // pred_region
      _
    $region33: #{tpu_custom_call.1} parent=1 // pred_fallthru
      _
    // Predicated region
    $region34: #{tpu_custom_call.1} parent=1 // pred_check
      _
    $region35: #{tpu_custom_call.1} parent=1 // pred_check_branch
      %86 = sbr.rel (0) target = $region37
    $region36: #{tpu_custom_call.1} parent=1 // pred_region
      _
    $region37: #{tpu_custom_call.1} parent=1 // pred_fallthru
      _
    // Predicated region
    $region38: #{tpu_custom_call.1} parent=1 // pred_check
      _
    $region39: #{tpu_custom_call.1} parent=1 // pred_check_branch
      %88 = sbr.rel (0) target = $region41
    $region40: #{tpu_custom_call.1} parent=1 // pred_region
      %89 = dma.done [#allocation3], 256
    $region41: #{tpu_custom_call.1} parent=1 // pred_fallthru
      _
    // Predicated region
    $region42: #{tpu_custom_call.1} parent=1 // pred_check
      _
    $region43: #{tpu_custom_call.1} parent=1 // pred_check_branch
      %91 = sbr.rel (0) target = $region45
    $region44: #{tpu_custom_call.1} parent=1 // pred_region
      %92 = dma.done [#allocation6], 256
    $region45: #{tpu_custom_call.1} parent=1 // pred_fallthru
      _
    // Predicated region
    $region46: #{tpu_custom_call.1} parent=1 // pred_check
      _
    $region47: #{tpu_custom_call.1} parent=1 // pred_check_branch
      %94 = sbr.rel (0) target = $region49
    $region48: #{tpu_custom_call.1} parent=1 // pred_region
      %95 = dma.done [#allocation6], 512
    $region49: #{tpu_custom_call.1} parent=1 // pred_fallthru
      _
    // Predicated region
    $region50: #{tpu_custom_call.1} parent=1 // pred_check
      _
    $region51: #{tpu_custom_call.1} parent=1 // pred_check_branch
      %97 = sbr.rel (0) target = $region53
    $region52: #{tpu_custom_call.1} parent=1 // pred_region
      %98 = dma.done [#allocation9], 3072
    $region53: #{tpu_custom_call.1} parent=1 // pred_fallthru
      _
    // Predicated region
    $region54: #{tpu_custom_call.1} parent=1 // pred_check
      _
    $region55: #{tpu_custom_call.1} parent=1 // pred_check_branch
      %100 = sbr.rel (0) target = $region57
    $region56: #{tpu_custom_call.1} parent=1 // pred_region
      %101 = dma.done [#allocation9], 48
    $region57: #{tpu_custom_call.1} parent=1 // pred_fallthru
      _
    %v103 = vld [vmem:[#allocation2] sm:$0xff]
    %v104 = vld [vmem:[#allocation2 + $0x8] sm:$0xff]
    %v105 = vld [vmem:[#allocation5] sm:$0xff]
    %v106 = vld [vmem:[#allocation5 + $0x8] sm:$0xff]
    %v107 = vld [vmem:[%s0] sm:$0xf]
    %v108 = vld [vmem:[%s0 + $0x4] sm:$0xf]
    %v109 = vpack.c.bf16 %v104, %v103
    %v110 = vld [vmem:[#allocation7] sm:$0xff]
    %v111 = vld [vmem:[#allocation7 + $0x8] sm:$0xff]
    %v112 = vld [vmem:[#allocation7 + $0x10] sm:$0xff]
    %v113 = vld [vmem:[#allocation7 + $0x18] sm:$0xff]
    %v116 = vunpack.c.l.b16 %v107
    %v117 = vunpack.c.l.b16 %v108
    %v118 = vpack.c.b16 %v117, %v116
    %v123 = vunpack.c.l.b16 %v110
    %v124 = vunpack.c.h.b16 %v110
    %v125 = vunpack.c.l.b16 %v111
    %v126 = vunpack.c.h.b16 %v111
    %v127 = vunpack.c.l.b16 %v112
    %v128 = vunpack.c.h.b16 %v112
    %v129 = vunpack.c.l.b16 %v113
    %v130 = vunpack.c.h.b16 %v113
    %v131 = vpack.c.b16 %v127, %v123
    %v132 = vpack.c.b16 %v128, %v124
    %v133 = vpack.c.b16 %v129, %v125
    %v134 = vpack.c.b16 %v130, %v126
    %vm139 = vcmask 130048
    %v141 = vsel %vm139, %v118, 0
    %143 = vmatprep.subr.bf16.mxu0 %v132
    %144 = vmatpush1.bf16.msra.mxu0 %v131
    %145 = vmatprep.subr.bf16.mxu0 0
    %146 = vmatpush1.bf16.msra.mxu0 0
    %147 = vmatprep.subr.bf16.mxu0 0
    %148 = vmatpush1.bf16.msra.mxu0 0
    %149 = vmatprep.subr.bf16.mxu0 0
    %150 = vmatpush1.bf16.msra.mxu0 0
    %151 = vmatprep.subr.bf16.mxu0 0
    %152 = vmatpush1.bf16.msra.mxu0 0
    %153 = vmatprep.subr.bf16.mxu0 0
    %154 = vmatpush1.bf16.msra.mxu0 0
    %155 = vmatprep.subr.bf16.mxu0 0
    %156 = vmatpush1.bf16.msra.mxu0 0
    %157 = vmatprep.subr.bf16.mxu0 0
    %158 = vmatpush1.bf16.msra.mxu0 0
    %159 = vmatprep.subr.bf16.mxu0 0
    %160 = vmatpush1.bf16.msra.mxu0 0
    %161 = vmatprep.subr.bf16.mxu0 0
    %162 = vmatpush1.bf16.msra.mxu0 0
    %163 = vmatprep.subr.bf16.mxu0 0
    %164 = vmatpush1.bf16.msra.mxu0 0
    %165 = vmatprep.subr.bf16.mxu0 0
    %166 = vmatpush1.bf16.msra.mxu0 0
    %167 = vmatprep.subr.bf16.mxu0 0
    %168 = vmatpush1.bf16.msra.mxu0 0
    %169 = vmatprep.subr.bf16.mxu0 0
    %170 = vmatpush1.bf16.msra.mxu0 0
    %171 = vmatprep.subr.bf16.mxu0 0
    %172 = vmatpush1.bf16.msra.mxu0 0
    %173 = vmatprep.subr.bf16.mxu0 0
    %174 = vmatpush1.bf16.msra.mxu0 0
    %175 = vmatprep.mubr.bf16.mxu0 0
    %176 = vmatmul.mubr.bf16.gmra.mrb[0].mxu0 %v141
    %v177 = vpop.f32.mrb[0].mxu0
    %v178 = vadd.f32 0.0, %v177
    %v179 = vpop.f32.mrb[0].mxu0
    %v180 = vadd.f32 0.0, %v179
    %v181 = vpop.f32.mrb[0].mxu0
    %v182 = vadd.f32 0.0, %v181
    %v183 = vpop.f32.mrb[0].mxu0
    %v184 = vadd.f32 0.0, %v183
    %185 = vdwg.mxu0
    %186 = vmatprep.subr.bf16.mxu0 %v134
    %187 = vmatpush1.bf16.msra.mxu0 %v133
    %188 = vmatprep.subr.bf16.mxu0 0
    %189 = vmatpush1.bf16.msra.mxu0 0
    %190 = vmatprep.subr.bf16.mxu0 0
    %191 = vmatpush1.bf16.msra.mxu0 0
    %192 = vmatprep.subr.bf16.mxu0 0
    %193 = vmatpush1.bf16.msra.mxu0 0
    %194 = vmatprep.subr.bf16.mxu0 0
    %195 = vmatpush1.bf16.msra.mxu0 0
    %196 = vmatprep.subr.bf16.mxu0 0
    %197 = vmatpush1.bf16.msra.mxu0 0
    %198 = vmatprep.subr.bf16.mxu0 0
    %199 = vmatpush1.bf16.msra.mxu0 0
    %200 = vmatprep.subr.bf16.mxu0 0
    %201 = vmatpush1.bf16.msra.mxu0 0
    %202 = vmatprep.subr.bf16.mxu0 0
    %203 = vmatpush1.bf16.msra.mxu0 0
    %204 = vmatprep.subr.bf16.mxu0 0
    %205 = vmatpush1.bf16.msra.mxu0 0
    %206 = vmatprep.subr.bf16.mxu0 0
    %207 = vmatpush1.bf16.msra.mxu0 0
    %208 = vmatprep.subr.bf16.mxu0 0
    %209 = vmatpush1.bf16.msra.mxu0 0
    %210 = vmatprep.subr.bf16.mxu0 0
    %211 = vmatpush1.bf16.msra.mxu0 0
    %212 = vmatprep.subr.bf16.mxu0 0
    %213 = vmatpush1.bf16.msra.mxu0 0
    %214 = vmatprep.subr.bf16.mxu0 0
    %215 = vmatpush1.bf16.msra.mxu0 0
    %216 = vmatprep.subr.bf16.mxu0 0
    %217 = vmatpush1.bf16.msra.mxu0 0
    %218 = vmatprep.mubr.bf16.mxu0 0
    %219 = vmatmul.mubr.bf16.gmra.mrb[0].mxu0 %v141
    %v220 = vpop.f32.mrb[0].mxu0
    %v221 = vadd.f32 0.0, %v220
    %v222 = vpop.f32.mrb[0].mxu0
    %v223 = vadd.f32 0.0, %v222
    %v224 = vpop.f32.mrb[0].mxu0
    %v225 = vadd.f32 0.0, %v224
    %v226 = vpop.f32.mrb[0].mxu0
    %v227 = vadd.f32 0.0, %v226
    %228 = vdwg.mxu0
    %v229 = vld [vmem:[#allocation8] sm:$0xff]
    %v230 = vld [vmem:[#allocation8 + $0x8] sm:$0xf]
    %v231 = vld [vmem:[#allocation8 + $0xc] sm:$0xff]
    %v232 = vld [vmem:[#allocation8 + $0x14] sm:$0xf]
    %v233 = vld [vmem:[#allocation8 + $0x18] sm:$0xff]
    %v234 = vld [vmem:[#allocation8 + $0x20] sm:$0xf]
    %v235 = vld [vmem:[#allocation8 + $0x24] sm:$0xff]
    %v236 = vld [vmem:[#allocation8 + $0x2c] sm:$0xf]
    %v237 = vld [vmem:[#allocation8 + $0x30] sm:$0xff]
    %v238 = vld [vmem:[#allocation8 + $0x38] sm:$0xf]
    %v239 = vld [vmem:[#allocation8 + $0x3c] sm:$0xff]
    %v240 = vld [vmem:[#allocation8 + $0x44] sm:$0xf]
    %v241 = vld [vmem:[#allocation8 + $0x48] sm:$0xff]
    %v242 = vld [vmem:[#allocation8 + $0x50] sm:$0xf]
    %v243 = vld [vmem:[#allocation8 + $0x54] sm:$0xff]
    %v244 = vld [vmem:[#allocation8 + $0x5c] sm:$0xf]
    %v245 = vld [vmem:[#allocation8 + $0x60] sm:$0xff]
    %v246 = vld [vmem:[#allocation8 + $0x68] sm:$0xf]
    %v247 = vld [vmem:[#allocation8 + $0x6c] sm:$0xff]
    %v248 = vld [vmem:[#allocation8 + $0x74] sm:$0xf]
    %v249 = vld [vmem:[#allocation8 + $0x78] sm:$0xff]
    %v250 = vld [vmem:[#allocation8 + $0x80] sm:$0xf]
    %v251 = vld [vmem:[#allocation8 + $0x84] sm:$0xff]
    %v252 = vld [vmem:[#allocation8 + $0x8c] sm:$0xf]
    %v253 = vld [vmem:[#allocation8 + $0x90] sm:$0xff]
    %v254 = vld [vmem:[#allocation8 + $0x98] sm:$0xf]
    %v255 = vld [vmem:[#allocation8 + $0x9c] sm:$0xff]
    %v256 = vld [vmem:[#allocation8 + $0xa4] sm:$0xf]
    %v257 = vld [vmem:[#allocation8 + $0xa8] sm:$0xff]
    %v258 = vld [vmem:[#allocation8 + $0xb0] sm:$0xf]
    %v259 = vld [vmem:[#allocation8 + $0xb4] sm:$0xff]
    %v260 = vld [vmem:[#allocation8 + $0xbc] sm:$0xf]
    %v293 = vunpack.c.l.b16 %v229
    %v294 = vunpack.c.h.b16 %v229
    %v295 = vunpack.c.l.b16 %v230
    %v296 = vunpack.c.l.b16 %v231
    %v297 = vunpack.c.h.b16 %v231
    %v298 = vunpack.c.l.b16 %v232
    %v299 = vunpack.c.l.b16 %v233
    %v300 = vunpack.c.h.b16 %v233
    %v301 = vunpack.c.l.b16 %v234
    %v302 = vunpack.c.l.b16 %v235
    %v303 = vunpack.c.h.b16 %v235
    %v304 = vunpack.c.l.b16 %v236
    %v305 = vunpack.c.l.b16 %v237
    %v306 = vunpack.c.h.b16 %v237
    %v307 = vunpack.c.l.b16 %v238
    %v308 = vunpack.c.l.b16 %v239
    %v309 = vunpack.c.h.b16 %v239
    %v310 = vunpack.c.l.b16 %v240
    %v311 = vunpack.c.l.b16 %v241
    %v312 = vunpack.c.h.b16 %v241
    %v313 = vunpack.c.l.b16 %v242
    %v314 = vunpack.c.l.b16 %v243
    %v315 = vunpack.c.h.b16 %v243
    %v316 = vunpack.c.l.b16 %v244
    %v317 = vunpack.c.l.b16 %v245
    %v318 = vunpack.c.h.b16 %v245
    %v319 = vunpack.c.l.b16 %v246
    %v320 = vunpack.c.l.b16 %v247
    %v321 = vunpack.c.h.b16 %v247
    %v322 = vunpack.c.l.b16 %v248
    %v323 = vunpack.c.l.b16 %v249
    %v324 = vunpack.c.h.b16 %v249
    %v325 = vunpack.c.l.b16 %v250
    %v326 = vunpack.c.l.b16 %v251
    %v327 = vunpack.c.h.b16 %v251
    %v328 = vunpack.c.l.b16 %v252
    %v329 = vunpack.c.l.b16 %v253
    %v330 = vunpack.c.h.b16 %v253
    %v331 = vunpack.c.l.b16 %v254
    %v332 = vunpack.c.l.b16 %v255
    %v333 = vunpack.c.h.b16 %v255
    %v334 = vunpack.c.l.b16 %v256
    %v335 = vunpack.c.l.b16 %v257
    %v336 = vunpack.c.h.b16 %v257
    %v337 = vunpack.c.l.b16 %v258
    %v338 = vunpack.c.l.b16 %v259
    %v339 = vunpack.c.h.b16 %v259
    %v340 = vunpack.c.l.b16 %v260
    %v341 = vpack.c.b16 %v296, %v293
    %v342 = vpack.c.b16 %v297, %v294
    %v343 = vpack.c.b16 %v298, %v295
    %v344 = vpack.c.b16 %v302, %v299
    %v345 = vpack.c.b16 %v303, %v300
    %v346 = vpack.c.b16 %v304, %v301
    %v347 = vpack.c.b16 %v308, %v305
    %v348 = vpack.c.b16 %v309, %v306
    %v349 = vpack.c.b16 %v310, %v307
    %v350 = vpack.c.b16 %v314, %v311
    %v351 = vpack.c.b16 %v315, %v312
    %v352 = vpack.c.b16 %v316, %v313
    %v353 = vpack.c.b16 %v320, %v317
    %v354 = vpack.c.b16 %v321, %v318
    %v355 = vpack.c.b16 %v322, %v319
    %v356 = vpack.c.b16 %v326, %v323
    %v357 = vpack.c.b16 %v327, %v324
    %v358 = vpack.c.b16 %v328, %v325
    %v359 = vpack.c.b16 %v332, %v329
    %v360 = vpack.c.b16 %v333, %v330
    %v361 = vpack.c.b16 %v334, %v331
    %v362 = vpack.c.b16 %v338, %v335
    %v363 = vpack.c.b16 %v339, %v336
    %v364 = vpack.c.b16 %v340, %v337
    %389 = vmatprep.subr.bf16.mxu0 %v342
    %390 = vmatpush1.bf16.msra.mxu0 %v341
    %391 = vmatprep.subr.bf16.mxu0 %v345
    %392 = vmatpush1.bf16.msra.mxu0 %v344
    %393 = vmatprep.subr.bf16.mxu0 %v348
    %394 = vmatpush1.bf16.msra.mxu0 %v347
    %395 = vmatprep.subr.bf16.mxu0 %v351
    %396 = vmatpush1.bf16.msra.mxu0 %v350
    %397 = vmatprep.subr.bf16.mxu0 %v354
    %398 = vmatpush1.bf16.msra.mxu0 %v353
    %399 = vmatprep.subr.bf16.mxu0 %v357
    %400 = vmatpush1.bf16.msra.mxu0 %v356
    %401 = vmatprep.subr.bf16.mxu0 %v360
    %402 = vmatpush1.bf16.msra.mxu0 %v359
    %403 = vmatprep.subr.bf16.mxu0 %v363
    %404 = vmatpush1.bf16.msra.mxu0 %v362
    %405 = vmatprep.subr.bf16.mxu0 0
    %406 = vmatpush1.bf16.msra.mxu0 0
    %407 = vmatprep.subr.bf16.mxu0 0
    %408 = vmatpush1.bf16.msra.mxu0 0
    %409 = vmatprep.subr.bf16.mxu0 0
    %410 = vmatpush1.bf16.msra.mxu0 0
    %411 = vmatprep.subr.bf16.mxu0 0
    %412 = vmatpush1.bf16.msra.mxu0 0
    %413 = vmatprep.subr.bf16.mxu0 0
    %414 = vmatpush1.bf16.msra.mxu0 0
    %415 = vmatprep.subr.bf16.mxu0 0
    %416 = vmatpush1.bf16.msra.mxu0 0
    %417 = vmatprep.subr.bf16.mxu0 0
    %418 = vmatpush1.bf16.msra.mxu0 0
    %419 = vmatprep.subr.bf16.mxu0 0
    %420 = vmatpush1.bf16.msra.mxu0 0
    %421 = vmatprep.mubr.bf16.mxu0 0
    %422 = vmatmul.mubr.bf16.gmra.mrb[0].mxu0 %v109
    %v423 = vpop.f32.mrb[0].mxu0
    %v424 = vadd.f32 0.0, %v423
    %v425 = vpop.f32.mrb[0].mxu0
    %v426 = vadd.f32 0.0, %v425
    %v427 = vpop.f32.mrb[0].mxu0
    %v428 = vadd.f32 0.0, %v427
    %v429 = vpop.f32.mrb[0].mxu0
    %v430 = vadd.f32 0.0, %v429
    %431 = vdwg.mxu0
    %432 = vmatprep.subr.bf16.mxu0 0
    %433 = vmatpush1.bf16.msra.mxu0 %v343
    %434 = vmatprep.subr.bf16.mxu0 0
    %435 = vmatpush1.bf16.msra.mxu0 %v346
    %436 = vmatprep.subr.bf16.mxu0 0
    %437 = vmatpush1.bf16.msra.mxu0 %v349
    %438 = vmatprep.subr.bf16.mxu0 0
    %439 = vmatpush1.bf16.msra.mxu0 %v352
    %440 = vmatprep.subr.bf16.mxu0 0
    %441 = vmatpush1.bf16.msra.mxu0 %v355
    %442 = vmatprep.subr.bf16.mxu0 0
    %443 = vmatpush1.bf16.msra.mxu0 %v358
    %444 = vmatprep.subr.bf16.mxu0 0
    %445 = vmatpush1.bf16.msra.mxu0 %v361
    %446 = vmatprep.subr.bf16.mxu0 0
    %447 = vmatpush1.bf16.msra.mxu0 %v364
    %448 = vmatprep.subr.bf16.mxu0 0
    %449 = vmatpush1.bf16.msra.mxu0 0
    %450 = vmatprep.subr.bf16.mxu0 0
    %451 = vmatpush1.bf16.msra.mxu0 0
    %452 = vmatprep.subr.bf16.mxu0 0
    %453 = vmatpush1.bf16.msra.mxu0 0
    %454 = vmatprep.subr.bf16.mxu0 0
    %455 = vmatpush1.bf16.msra.mxu0 0
    %456 = vmatprep.subr.bf16.mxu0 0
    %457 = vmatpush1.bf16.msra.mxu0 0
    %458 = vmatprep.subr.bf16.mxu0 0
    %459 = vmatpush1.bf16.msra.mxu0 0
    %460 = vmatprep.subr.bf16.mxu0 0
    %461 = vmatpush1.bf16.msra.mxu0 0
    %462 = vmatprep.subr.bf16.mxu0 0
    %463 = vmatpush1.bf16.msra.mxu0 0
    %464 = vmatprep.mubr.bf16.mxu0 0
    %465 = vmatmul.mubr.bf16.gmra.mrb[0].mxu0 %v109
    %v466 = vpop.f32.mrb[0].mxu0
    %v467 = vadd.f32 0.0, %v466
    %v468 = vpop.f32.mrb[0].mxu0
    %v469 = vpop.f32.mrb[0].mxu0
    %v470 = vadd.f32 0.0, %v469
    %v471 = vpop.f32.mrb[0].mxu0
    %472 = vdwg.mxu0
    %v473 = vadd.f32 %v178, %v424
    %v474 = vadd.f32 %v180, %v426
    %v475 = vadd.f32 %v221, %v467
    %v476 = vadd.f32 %v182, %v428
    %v477 = vadd.f32 %v184, %v430
    %v478 = vadd.f32 %v225, %v470
    %v479 = vld [vmem:[#allocation10] sm:$0x7]
    %v481 = vlaneseq
    %v482 = vshrl.u32 %v481, 7
    %v483 = vsub.s32 0, %v482
    %v484 = vrot.slane %v479, %v483
    %v485 = vlaneseq
    %v486 = vshrl.u32 %v485, 7
    %v487 = vsub.s32 1, %v486
    %v488 = vrot.slane %v479, %v487
    %v489 = vlaneseq
    %v490 = vshrl.u32 %v489, 7
    %v491 = vsub.s32 2, %v490
    %v492 = vrot.slane %v479, %v491
    %v496 = vadd.f32 %v473, %v484
    %v497 = vadd.f32 %v474, %v488
    %v498 = vadd.f32 %v475, %v492
    %v499 = vadd.f32 %v476, %v484
    %v500 = vadd.f32 %v477, %v488
    %v501 = vadd.f32 %v478, %v492
    %v502 = vld [vmem:[%s6] sm:$0x1]
    %v504 = vlaneseq
    %v505 = vshrl.u32 %v504, 7
    %v506 = vsub.s32 0, %v505
    %v507 = vrot.slane %v502, %v506
    %v509 = vadd.f32 %v223, %v507
    %v510 = vadd.f32 %v227, %v507
    %v511 = vxor.u32 %v496, 2147483648
    %v512 = vxor.u32 %v499, 2147483648
    %v513 = vmul.f32 %v511, 1.442695
    %v514 = vpow.pop %v513
    %v515 = vmul.f32 %v512, 1.442695
    %v516 = vpow.pop %v515
    %v517 = vadd.f32 %v514, 1.0
    %v518 = vadd.f32 %v516, 1.0
    %v519 = vrcp.pop %v517
    %v520 = vmul.f32 1.0, %v519
    %v521 = vrcp.pop %v518
    %v522 = vmul.f32 1.0, %v521
    %v523 = vmul.f32 %v520, 0.5
    %v524 = vmul.f32 %v522, 0.5
    %v525 = vxor.u32 %v497, 2147483648
    %v526 = vxor.u32 %v500, 2147483648
    %v527 = vmul.f32 %v525, 1.442695
    %v528 = vpow.pop %v527
    %v529 = vmul.f32 %v526, 1.442695
    %v530 = vpow.pop %v529
    %v531 = vadd.f32 %v528, 1.0
    %v532 = vadd.f32 %v530, 1.0
    %v533 = vrcp.pop %v531
    %v534 = vmul.f32 1.0, %v533
    %v535 = vrcp.pop %v532
    %v536 = vmul.f32 1.0, %v535
    %v537 = vmul.f32 %v534, 0.5
    %v538 = vmul.f32 %v536, 0.5
    %v539 = vsub.f32 1.0, %v537
    %v540 = vsub.f32 1.0, %v538
    %v541 = vmul.f32 %v539, %v105
    %v542 = vmul.f32 %v540, %v106
    %v543 = vtanh.pop %v498
    %v544 = vtanh.pop %v501
    %v545 = vmul.f32 %v537, %v543
    %v546 = vmul.f32 %v538, %v544
    %v547 = vadd.f32 %v541, %v545
    %v548 = vadd.f32 %v542, %v546
    %v549 = vpack.c.bf16 %v548, %v547
    %v550 = vld [vmem:[%s7] sm:$0xf]
    %v551 = vld [vmem:[%s7 + $0x4] sm:$0xf]
    %v552 = vld [vmem:[%s7 + $0x8] sm:$0xf]
    %v553 = vld [vmem:[%s7 + $0xc] sm:$0xf]
    %v554 = vld [vmem:[%s7 + $0x10] sm:$0xf]
    %v555 = vld [vmem:[%s7 + $0x14] sm:$0xf]
    %v556 = vld [vmem:[%s7 + $0x18] sm:$0xf]
    %v557 = vld [vmem:[%s7 + $0x1c] sm:$0xf]
    %v558 = vld [vmem:[%s7 + $0x20] sm:$0xf]
    %v559 = vld [vmem:[%s7 + $0x24] sm:$0xf]
    %v560 = vld [vmem:[%s7 + $0x28] sm:$0xf]
    %v561 = vld [vmem:[%s7 + $0x2c] sm:$0xf]
    %v562 = vld [vmem:[%s7 + $0x30] sm:$0xf]
    %v563 = vld [vmem:[%s7 + $0x34] sm:$0xf]
    %v564 = vld [vmem:[%s7 + $0x38] sm:$0xf]
    %v565 = vld [vmem:[%s7 + $0x3c] sm:$0xf]
    %v566 = vld [vmem:[%s8] sm:$0x1]
    %v568 = vlaneseq
    %v569 = vshrl.u32 %v568, 7
    %v570 = vsub.s32 0, %v569
    %v571 = vrot.slane %v566, %v570
    %v589 = vunpack.c.l.b16 %v550
    %v590 = vunpack.c.l.b16 %v551
    %v591 = vunpack.c.l.b16 %v552
    %v592 = vunpack.c.l.b16 %v553
    %v593 = vunpack.c.l.b16 %v554
    %v594 = vunpack.c.l.b16 %v555
    %v595 = vunpack.c.l.b16 %v556
    %v596 = vunpack.c.l.b16 %v557
    %v597 = vunpack.c.l.b16 %v558
    %v598 = vunpack.c.l.b16 %v559
    %v599 = vunpack.c.l.b16 %v560
    %v600 = vunpack.c.l.b16 %v561
    %v601 = vunpack.c.l.b16 %v562
    %v602 = vunpack.c.l.b16 %v563
    %v603 = vunpack.c.l.b16 %v564
    %v604 = vunpack.c.l.b16 %v565
    %v605 = vpack.c.b16 %v590, %v589
    %v606 = vpack.c.b16 %v592, %v591
    %v607 = vpack.c.b16 %v594, %v593
    %v608 = vpack.c.b16 %v596, %v595
    %v609 = vpack.c.b16 %v598, %v597
    %v610 = vpack.c.b16 %v600, %v599
    %v611 = vpack.c.b16 %v602, %v601
    %v612 = vpack.c.b16 %v604, %v603
    %621 = vmatprep.subr.bf16.mxu0 0
    %622 = vmatpush1.bf16.msra.mxu0 %v605
    %623 = vmatprep.subr.bf16.mxu0 0
    %624 = vmatpush1.bf16.msra.mxu0 %v606
    %625 = vmatprep.subr.bf16.mxu0 0
    %626 = vmatpush1.bf16.msra.mxu0 %v607
    %627 = vmatprep.subr.bf16.mxu0 0
    %628 = vmatpush1.bf16.msra.mxu0 %v608
    %629 = vmatprep.subr.bf16.mxu0 0
    %630 = vmatpush1.bf16.msra.mxu0 %v609
    %631 = vmatprep.subr.bf16.mxu0 0
    %632 = vmatpush1.bf16.msra.mxu0 %v610
    %633 = vmatprep.subr.bf16.mxu0 0
    %634 = vmatpush1.bf16.msra.mxu0 %v611
    %635 = vmatprep.subr.bf16.mxu0 0
    %636 = vmatpush1.bf16.msra.mxu0 %v612
    %637 = vmatprep.subr.bf16.mxu0 0
    %638 = vmatpush1.bf16.msra.mxu0 0
    %639 = vmatprep.subr.bf16.mxu0 0
    %640 = vmatpush1.bf16.msra.mxu0 0
    %641 = vmatprep.subr.bf16.mxu0 0
    %642 = vmatpush1.bf16.msra.mxu0 0
    %643 = vmatprep.subr.bf16.mxu0 0
    %644 = vmatpush1.bf16.msra.mxu0 0
    %645 = vmatprep.subr.bf16.mxu0 0
    %646 = vmatpush1.bf16.msra.mxu0 0
    %647 = vmatprep.subr.bf16.mxu0 0
    %648 = vmatpush1.bf16.msra.mxu0 0
    %649 = vmatprep.subr.bf16.mxu0 0
    %650 = vmatpush1.bf16.msra.mxu0 0
    %651 = vmatprep.subr.bf16.mxu0 0
    %652 = vmatpush1.bf16.msra.mxu0 0
    %653 = vmatprep.mubr.bf16.mxu0 0
    %654 = vmatmul.mubr.bf16.gmra.mrb[0].mxu0 %v549
    %v655 = vpop.f32.mrb[0].mxu0
    %v656 = vadd.f32 %v571, %v655
    %v657 = vpop.f32.mrb[0].mxu0
    %v658 = vpop.f32.mrb[0].mxu0
    %v659 = vadd.f32 %v571, %v658
    %v660 = vpop.f32.mrb[0].mxu0
    %661 = vdwg.mxu0
    %v662 = vsub.f32 1.0, %v523
    %v663 = vsub.f32 1.0, %v524
    %v664 = vmul.f32 %v662, %v103
    %v665 = vmul.f32 %v663, %v104
    %v666 = vadd.f32 %v656, %v509
    %v667 = vadd.f32 %v659, %v510
    %v668 = vtanh.pop %v666
    %v669 = vtanh.pop %v667
    %v670 = vmul.f32 %v523, %v668
    %v671 = vmul.f32 %v524, %v669
    %v672 = vadd.f32 %v664, %v670
    %v673 = vadd.f32 %v665, %v671
    %674 = vst [vmem:[#allocation11] sm:$0xff] %v672
    %675 = vst [vmem:[#allocation11 + $0x8] sm:$0xff] %v673
    %676 = vst [vmem:[#allocation12] sm:$0xff] %v547
    %677 = vst [vmem:[#allocation12 + $0x8] sm:$0xff] %v548
    // Predicated region
    $region58: #{tpu_custom_call.1} parent=1 // pred_check
      _
    $region59: #{tpu_custom_call.1} parent=1 // pred_check_branch
      %679 = sbr.rel (0) target = $region61
    $region60: #{tpu_custom_call.1} parent=1 // pred_region
      %s681 = ssub.s32 256, 256
      %682 = vsyncadd [#allocation4], %s681
      %s683 = sshll.u32 [#allocation11], 4
      %s684 = int_to_ptr.vmem [resolvable:$true] %s683
      %689 = dma.vmem_to_hbm [thread:$0]  %s684, 256, %s9, [#allocation4], 128, 128, 8
    $region61: #{tpu_custom_call.1} parent=1 // pred_fallthru
      _
    // Predicated region
    $region62: #{tpu_custom_call.1} parent=1 // pred_check
      _
    $region63: #{tpu_custom_call.1} parent=1 // pred_check_branch
      %691 = sbr.rel (0) target = $region65
    $region64: #{tpu_custom_call.1} parent=1 // pred_region
      %s693 = ssub.s32 256, 256
      %694 = vsyncadd [#allocation13], %s693
      %s695 = sshll.u32 [#allocation12], 4
      %s696 = int_to_ptr.vmem [resolvable:$true] %s695
      %701 = dma.vmem_to_hbm [thread:$0]  %s696, 256, %s10, [#allocation13], 128, 128, 8
    $region65: #{tpu_custom_call.1} parent=1 // pred_fallthru
      _
    // Predicated region
    $region66: #{tpu_custom_call.1} parent=1 // pred_check
      _
    $region67: #{tpu_custom_call.1} parent=1 // pred_check_branch
      %703 = sbr.rel (0) target = $region69
    $region68: #{tpu_custom_call.1} parent=1 // pred_region
      %704 = dma.done [#allocation4], 256
    $region69: #{tpu_custom_call.1} parent=1 // pred_fallthru
      _
    // Predicated region
    $region70: #{tpu_custom_call.1} parent=1 // pred_check
      _
    $region71: #{tpu_custom_call.1} parent=1 // pred_check_branch
      %706 = sbr.rel (0) target = $region73
    $region72: #{tpu_custom_call.1} parent=1 // pred_region
      %707 = dma.done [#allocation13], 256
    $region73: #{tpu_custom_call.1} parent=1 // pred_fallthru
      _
    %708 = vsyncpa [#allocation3], 1
    %709 = vsyncpa [#allocation6], 1
    %710 = vsyncpa [#allocation9], 1
    %711 = vsyncpa [#allocation4], 1
    %712 = vsyncpa [#allocation13], 1

</llo_original>
